<compile_context>
chip_gen: v7x
topology: tpu7x:2x2x1
jax: 0.10.0
libtpu: 0.0.40
codegen_flags: <defaults>
</compile_context>

<pallas_src>
import functools
import math

import jax
import jax.numpy as jnp
from jax.experimental import pallas as pl
from jax.experimental.pallas import tpu as pltpu

IN_DIM = 28 * 28
HID = 64
HID_PAD = 128      # lane-dense hidden width
OUT = 10
OUT_PAD = 128      # lane-dense logits width
NEG_BIG = -1e30    # masks padded logit lanes out of log_softmax


def _round_up(n, m):
    return ((n + m - 1) // m) * m


def _mlp_kernel(x_ref, w1_ref, w2_ref, w3_ref, w4_ref, b_ref, o_ref):
    # x: (TB, 784) bf16; w*: bf16 lane-padded to 128; b: (4, 128) f32.
    b = b_ref[...]

    # fc1 + relu
    h = jnp.dot(x_ref[...], w1_ref[...], preferred_element_type=jnp.float32)
    h = jnp.maximum(h + b[0:1, :], 0.0)
    # fc2 + relu
    h = jnp.dot(h.astype(jnp.bfloat16), w2_ref[...],
                preferred_element_type=jnp.float32)
    h = jnp.maximum(h + b[1:2, :], 0.0)
    # fc3 + relu
    h = jnp.dot(h.astype(jnp.bfloat16), w3_ref[...],
                preferred_element_type=jnp.float32)
    h = jnp.maximum(h + b[2:3, :], 0.0)
    # fc4 (+ -1e30 on padded lanes so they vanish from the softmax reduction)
    logits = jnp.dot(h.astype(jnp.bfloat16), w4_ref[...],
                     preferred_element_type=jnp.float32)
    logits = logits + b[3:4, :]

    # log_softmax over the class axis (padded lanes contribute exp(...) == 0)
    m = jnp.max(logits, axis=-1, keepdims=True)
    shifted = logits - m
    lse = jnp.log(jnp.sum(jnp.exp(shifted), axis=-1, keepdims=True))
    o_ref[...] = (shifted - lse).astype(o_ref.dtype)


def _pack_padded_params(params):
    """Pad weights to 128-lane bf16 and pack the 4 biases into one (4,128) f32."""
    bf16 = jnp.bfloat16
    w1 = jnp.zeros((IN_DIM, HID_PAD), bf16).at[:, :HID].set(
        params["w1"].astype(bf16))
    w2 = jnp.zeros((HID_PAD, HID_PAD), bf16).at[:HID, :HID].set(
        params["w2"].astype(bf16))
    w3 = jnp.zeros((HID_PAD, HID_PAD), bf16).at[:HID, :HID].set(
        params["w3"].astype(bf16))
    w4 = jnp.zeros((HID_PAD, OUT_PAD), bf16).at[:HID, :OUT].set(
        params["w4"].astype(bf16))
    b = jnp.zeros((4, HID_PAD), jnp.float32)
    b = b.at[0, :HID].set(params["b1"].reshape(-1))
    b = b.at[1, :HID].set(params["b2"].reshape(-1))
    b = b.at[2, :HID].set(params["b3"].reshape(-1))
    b = b.at[3, :].set(NEG_BIG)
    b = b.at[3, :OUT].set(params["b4"].reshape(-1))
    return w1, w2, w3, w4, b


@functools.partial(jax.jit, static_argnames=("tb",))
def mlp_forward(x, params, tb=1024):
    """x: (B, 784) float32. Returns (B, 10) float32 log-probabilities."""
    B = x.shape[0]
    TB = min(tb, _round_up(B, 8))          # batch tile (rows per grid step)
    B_pad = _round_up(B, TB)

    w1, w2, w3, w4, b = _pack_padded_params(params)
    xp = jnp.zeros((B_pad, IN_DIM), jnp.bfloat16).at[:B, :].set(
        x.astype(jnp.bfloat16))

    full = lambda a: pl.BlockSpec(a.shape, lambda i: (0,) * a.ndim)
    out = pl.pallas_call(
        _mlp_kernel,
        out_shape=jax.ShapeDtypeStruct((B_pad, OUT_PAD), jnp.float32),
        grid=(B_pad // TB,),
        in_specs=[pl.BlockSpec((TB, IN_DIM), lambda i: (i, 0)),
                  full(w1), full(w2), full(w3), full(w4), full(b)],
        out_specs=pl.BlockSpec((TB, OUT_PAD), lambda i: (i, 0)),
        compiler_params=pltpu.CompilerParams(
            dimension_semantics=("parallel",)),
    )(xp, w1, w2, w3, w4, b)
    return out[:B, :OUT]


def init_params(key):
    """Deterministic init mimicking PyTorch Linear default U(-1/sqrt(fan_in), +)."""
    dims = [(IN_DIM, HID), (HID, HID), (HID, HID), (HID, OUT)]
    params = {}
    for i, (fan_in, fan_out) in enumerate(dims, start=1):
        key, kw, kb = jax.random.split(key, 3)
        bound = 1.0 / math.sqrt(fan_in)
        # stored as (in, out) so the kernel does x @ W
        params[f"w{i}"] = jax.random.uniform(
            kw, (fan_in, fan_out), jnp.float32, -bound, bound)
        params[f"b{i}"] = jax.random.uniform(
            kb, (1, fan_out), jnp.float32, -bound, bound)
    return params


def reference_forward_bf16(x, params):
    """Mirrors the kernel's compute path (bf16 matmuls, f32 accumulate)."""
    bf16, f32 = jnp.bfloat16, jnp.float32
    h = jnp.maximum(jnp.dot(x.astype(bf16), params["w1"].astype(bf16),
                            preferred_element_type=f32) + params["b1"], 0.0)
    h = jnp.maximum(jnp.dot(h.astype(bf16), params["w2"].astype(bf16),
                            preferred_element_type=f32) + params["b2"], 0.0)
    h = jnp.maximum(jnp.dot(h.astype(bf16), params["w3"].astype(bf16),
                            preferred_element_type=f32) + params["b3"], 0.0)
    logits = jnp.dot(h.astype(bf16), params["w4"].astype(bf16),
                     preferred_element_type=f32) + params["b4"]
    return jax.nn.log_softmax(logits, axis=1)


def reference_forward_f32(x, params):
    """Original module semantics (pure f32)."""
    h = jnp.maximum(x @ params["w1"] + params["b1"], 0.0)
    h = jnp.maximum(h @ params["w2"] + params["b2"], 0.0)
    h = jnp.maximum(h @ params["w3"] + params["b3"], 0.0)
    logits = h @ params["w4"] + params["b4"]
    return jax.nn.log_softmax(logits, axis=1)


if __name__ == "__main__":
    key = jax.random.PRNGKey(0)
    kx, kp = jax.random.split(key)
    B = 20  # exercises grid > 1 and the padded last tile (with tb=8)
    x = jax.random.normal(kx, (B, IN_DIM), jnp.float32)
    params = init_params(kp)

    out = mlp_forward(x, params, tb=8)
    out = jax.block_until_ready(out)
    assert out.shape == (B, OUT)

    ref_bf16 = reference_forward_bf16(x, params)
    ref_f32 = reference_forward_f32(x, params)
    assert jnp.allclose(out, ref_bf16, atol=2e-3, rtol=2e-3), (
        float(jnp.max(jnp.abs(out - ref_bf16))))
    assert jnp.allclose(out, ref_f32, atol=1e-1, rtol=1e-1), (
        float(jnp.max(jnp.abs(out - ref_f32))))

    print("KERNEL_OK")
</pallas_src>

<mosaic_0001>
module attributes {stable_mosaic.version = 11 : i64} {
  func.func @_mlp_kernel(%arg0: i32, %arg1: memref<8x784xbf16, #tpu.memory_space<vmem>>, %arg2: memref<784x128xbf16, #tpu.memory_space<vmem>>, %arg3: memref<128x128xbf16, #tpu.memory_space<vmem>>, %arg4: memref<128x128xbf16, #tpu.memory_space<vmem>>, %arg5: memref<128x128xbf16, #tpu.memory_space<vmem>>, %arg6: memref<4x128xf32, #tpu.memory_space<vmem>>, %arg7: memref<8x128xf32, #tpu.memory_space<vmem>>) attributes {dimension_semantics = [#tpu.dimension_semantics<parallel>], iteration_bounds = array<i64: 3>, scalar_prefetch = 0 : i64, scratch_operands = 0 : i64, tpu.core_type = #tpu.core_type<tc>, window_params = [{transform_indices = @transform_0, window_bounds = array<i64: 8, 784>}, {pipeline_mode = #tpu.pipeline_mode<synchronous>, transform_indices = @transform_1, window_bounds = array<i64: 784, 128>}, {pipeline_mode = #tpu.pipeline_mode<synchronous>, transform_indices = @transform_2, window_bounds = array<i64: 128, 128>}, {pipeline_mode = #tpu.pipeline_mode<synchronous>, transform_indices = @transform_3, window_bounds = array<i64: 128, 128>}, {pipeline_mode = #tpu.pipeline_mode<synchronous>, transform_indices = @transform_4, window_bounds = array<i64: 128, 128>}, {pipeline_mode = #tpu.pipeline_mode<synchronous>, transform_indices = @transform_5, window_bounds = array<i64: 4, 128>}, {transform_indices = @transform_6, window_bounds = array<i64: 8, 128>}]} {
    %c0 = arith.constant 0 : index
    %c0_0 = arith.constant 0 : index
    %0 = vector.load %arg6[%c0, %c0_0] : memref<4x128xf32, #tpu.memory_space<vmem>>, vector<4x128xf32>
    %c0_1 = arith.constant 0 : index
    %c0_2 = arith.constant 0 : index
    %1 = vector.load %arg1[%c0_1, %c0_2] : memref<8x784xbf16, #tpu.memory_space<vmem>>, vector<8x784xbf16>
    %c0_3 = arith.constant 0 : index
    %c0_4 = arith.constant 0 : index
    %2 = vector.load %arg2[%c0_3, %c0_4] : memref<784x128xbf16, #tpu.memory_space<vmem>>, vector<784x128xbf16>
    %cst = arith.constant dense<0.000000e+00> : vector<8x128xf32>
    %3 = tpu.matmul %1, %2, %cst {dimension_numbers = #tpu.dot_dimension_numbers<[1], [0], [0], [1], [0, 0, 1, 1], [], []>} : vector<8x784xbf16>, vector<784x128xbf16>, vector<8x128xf32> -> vector<8x128xf32>
    %4 = vector.extract_strided_slice %0 {offsets = [0, 0], sizes = [1, 128], strides = [1, 1]} : vector<4x128xf32> to vector<1x128xf32>
    %5 = vector.broadcast %4 : vector<1x128xf32> to vector<8x128xf32>
    %6 = arith.addf %3, %5 : vector<8x128xf32>
    %cst_5 = arith.constant 0.000000e+00 : f32
    %7 = vector.broadcast %cst_5 : f32 to vector<8x128xf32>
    %8 = arith.maximumf %6, %7 : vector<8x128xf32>
    %9 = arith.truncf %8 : vector<8x128xf32> to vector<8x128xbf16>
    %c0_6 = arith.constant 0 : index
    %c0_7 = arith.constant 0 : index
    %10 = vector.load %arg3[%c0_6, %c0_7] : memref<128x128xbf16, #tpu.memory_space<vmem>>, vector<128x128xbf16>
    %cst_8 = arith.constant dense<0.000000e+00> : vector<8x128xf32>
    %11 = tpu.matmul %9, %10, %cst_8 {dimension_numbers = #tpu.dot_dimension_numbers<[1], [0], [0], [1], [0, 0, 1, 1], [], []>} : vector<8x128xbf16>, vector<128x128xbf16>, vector<8x128xf32> -> vector<8x128xf32>
    %12 = vector.extract_strided_slice %0 {offsets = [1, 0], sizes = [1, 128], strides = [1, 1]} : vector<4x128xf32> to vector<1x128xf32>
    %13 = vector.broadcast %12 : vector<1x128xf32> to vector<8x128xf32>
    %14 = arith.addf %11, %13 : vector<8x128xf32>
    %cst_9 = arith.constant 0.000000e+00 : f32
    %15 = vector.broadcast %cst_9 : f32 to vector<8x128xf32>
    %16 = arith.maximumf %14, %15 : vector<8x128xf32>
    %17 = arith.truncf %16 : vector<8x128xf32> to vector<8x128xbf16>
    %c0_10 = arith.constant 0 : index
    %c0_11 = arith.constant 0 : index
    %18 = vector.load %arg4[%c0_10, %c0_11] : memref<128x128xbf16, #tpu.memory_space<vmem>>, vector<128x128xbf16>
    %cst_12 = arith.constant dense<0.000000e+00> : vector<8x128xf32>
    %19 = tpu.matmul %17, %18, %cst_12 {dimension_numbers = #tpu.dot_dimension_numbers<[1], [0], [0], [1], [0, 0, 1, 1], [], []>} : vector<8x128xbf16>, vector<128x128xbf16>, vector<8x128xf32> -> vector<8x128xf32>
    %20 = vector.extract_strided_slice %0 {offsets = [2, 0], sizes = [1, 128], strides = [1, 1]} : vector<4x128xf32> to vector<1x128xf32>
    %21 = vector.broadcast %20 : vector<1x128xf32> to vector<8x128xf32>
    %22 = arith.addf %19, %21 : vector<8x128xf32>
    %cst_13 = arith.constant 0.000000e+00 : f32
    %23 = vector.broadcast %cst_13 : f32 to vector<8x128xf32>
    %24 = arith.maximumf %22, %23 : vector<8x128xf32>
    %25 = arith.truncf %24 : vector<8x128xf32> to vector<8x128xbf16>
    %c0_14 = arith.constant 0 : index
    %c0_15 = arith.constant 0 : index
    %26 = vector.load %arg5[%c0_14, %c0_15] : memref<128x128xbf16, #tpu.memory_space<vmem>>, vector<128x128xbf16>
    %cst_16 = arith.constant dense<0.000000e+00> : vector<8x128xf32>
    %27 = tpu.matmul %25, %26, %cst_16 {dimension_numbers = #tpu.dot_dimension_numbers<[1], [0], [0], [1], [0, 0, 1, 1], [], []>} : vector<8x128xbf16>, vector<128x128xbf16>, vector<8x128xf32> -> vector<8x128xf32>
    %28 = vector.extract_strided_slice %0 {offsets = [3, 0], sizes = [1, 128], strides = [1, 1]} : vector<4x128xf32> to vector<1x128xf32>
    %29 = vector.broadcast %28 : vector<1x128xf32> to vector<8x128xf32>
    %30 = arith.addf %27, %29 : vector<8x128xf32>
    %cst_17 = arith.constant dense<0xFF800000> : vector<8xf32>
    %31 = vector.multi_reduction <maximumf>, %30, %cst_17 [1] : vector<8x128xf32> to vector<8xf32>
    %32 = vector.shape_cast %31 : vector<8xf32> to vector<8x1xf32>
    %33 = vector.broadcast %32 : vector<8x1xf32> to vector<8x128xf32>
    %34 = arith.subf %30, %33 : vector<8x128xf32>
    %35 = math.exp %34 : vector<8x128xf32>
    %cst_18 = arith.constant dense<0.000000e+00> : vector<8xf32>
    %36 = vector.multi_reduction <add>, %35, %cst_18 [1] : vector<8x128xf32> to vector<8xf32>
    %37 = vector.shape_cast %36 : vector<8xf32> to vector<8x1xf32>
    %38 = math.log %37 : vector<8x1xf32>
    %39 = vector.broadcast %38 : vector<8x1xf32> to vector<8x128xf32>
    %40 = arith.subf %34, %39 : vector<8x128xf32>
    %c0_19 = arith.constant 0 : index
    %c0_20 = arith.constant 0 : index
    %41 = vector.load %arg7[%c0_19, %c0_20] : memref<8x128xf32, #tpu.memory_space<vmem>>, vector<8x128xf32>
    tpu.vector_store %arg7[%c0_19, %c0_20], %40 {strides = array<i32>} : memref<8x128xf32, #tpu.memory_space<vmem>>, vector<8x128xf32>,
    return
  }
  func.func @transform_0(%arg0: i32) -> (i32, i32) {
    %c0_i32 = arith.constant 0 : i32
    %c0_i32_0 = arith.constant 0 : i32
    return %arg0, %c0_i32 : i32, i32
  }
  func.func @transform_1(%arg0: i32) -> (i32, i32) {
    %c0_i32 = arith.constant 0 : i32
    %c0_i32_0 = arith.constant 0 : i32
    %c0_i32_1 = arith.constant 0 : i32
    return %c0_i32, %c0_i32_0 : i32, i32
  }
  func.func @transform_2(%arg0: i32) -> (i32, i32) {
    %c0_i32 = arith.constant 0 : i32
    %c0_i32_0 = arith.constant 0 : i32
    %c0_i32_1 = arith.constant 0 : i32
    return %c0_i32, %c0_i32_0 : i32, i32
  }
  func.func @transform_3(%arg0: i32) -> (i32, i32) {
    %c0_i32 = arith.constant 0 : i32
    %c0_i32_0 = arith.constant 0 : i32
    %c0_i32_1 = arith.constant 0 : i32
    return %c0_i32, %c0_i32_0 : i32, i32
  }
  func.func @transform_4(%arg0: i32) -> (i32, i32) {
    %c0_i32 = arith.constant 0 : i32
    %c0_i32_0 = arith.constant 0 : i32
    %c0_i32_1 = arith.constant 0 : i32
    return %c0_i32, %c0_i32_0 : i32, i32
  }
  func.func @transform_5(%arg0: i32) -> (i32, i32) {
    %c0_i32 = arith.constant 0 : i32
    %c0_i32_0 = arith.constant 0 : i32
    %c0_i32_1 = arith.constant 0 : i32
    return %c0_i32, %c0_i32_0 : i32, i32
  }
  func.func @transform_6(%arg0: i32) -> (i32, i32) {
    %c0_i32 = arith.constant 0 : i32
    %c0_i32_0 = arith.constant 0 : i32
    return %arg0, %c0_i32 : i32, i32
  }
}

</mosaic_0001>

<llo_original>
// kernel: mlp_forward.1
$region0: #{mlp_forward.1}
  #allocation0 [shape = 'u32[]', space=smem, size = 0x4, offset = 0x4, fixed_abs, tag = 'smem constant byte address 0x4 - core index']
  #allocation1 [shape = 'u32[144,128]{1,0:T(1,128)}', space=vmem, size = 0x12000, scoped, tag = 'internal scratch']
  %s0 = inlined_call_operand.vmem [shape: bf16[24,784], index: 0, kind: input, shape index: {}]
  %s1 = inlined_call_operand.vmem [shape: bf16[784,128], index: 1, kind: input, shape index: {}]
  %s2 = inlined_call_operand.vmem [shape: bf16[128,128], index: 2, kind: input, shape index: {}]
  %s3 = inlined_call_operand.vmem [shape: bf16[128,128], index: 3, kind: input, shape index: {}]
  %s4 = inlined_call_operand.vmem [shape: bf16[128,128], index: 4, kind: input, shape index: {}]
  %s5 = inlined_call_operand.vmem [shape: f32[4,128], index: 5, kind: input, shape index: {}]
  %s6 = inlined_call_operand.vmem [shape: f32[24,128], index: 6, kind: output, shape index: {}]
  %s7 = sld [smem:[#allocation0]]
  $region57: #{mlp_forward.1} parent=0
    _
  %s9 = ssub.s32 1, %s7
  %s10 = scalar_select 0, %s9, %s7
  loop: start=0, step=1, limit=5
  $region2: #{mlp_forward.1} parent=0 // loop_pre_header
    _
  $region3: #{mlp_forward.1} parent=0 // loop_header
    %s12 = sphi 0, %s16
    %p13 = scmp.ge.s32.totalorder %s12, 5
    %s22 = sphi 0, %s24
    %s25 = sphi 0, %s22
    %s26 = sphi 0, %s25
    %s42 = sphi 0, %s26
    %s46 = sphi 0, %s46
    %s48 = sphi 0, %s46
    %s49 = sphi 0, %s48
    %s63 = sphi 0, %s49
    %s67 = sphi 0, %s67
    %s69 = sphi 0, %s67
    %s70 = sphi 0, %s69
    %s84 = sphi 0, %s70
    %s88 = sphi 0, %s88
    %s90 = sphi 0, %s88
    %s91 = sphi 0, %s90
    %s105 = sphi 0, %s91
    %s109 = sphi 0, %s109
    %s111 = sphi 0, %s109
    %s112 = sphi 0, %s111
    %s126 = sphi 0, %s112
    %s130 = sphi 0, %s130
    %s132 = sphi 0, %s130
    %s133 = sphi 0, %s132
    %s147 = sphi 0, %s133
    %s153 = sphi 0, %s155
    %s156 = sphi 0, %s153
    %s157 = sphi 0, %s156
    %s173 = sphi 0, %s157
  $region4: #{mlp_forward.1} parent=0 // loop_header_branch
    %15 = sbr.rel (%p13) target = $region8
  $region5: #{mlp_forward.1} parent=0 // loop_body
    %s17 = ssub.s32 %s12, 1
    %s18 = ssub.s32 %s12, 2
    %s19 = sadd.s32 %s12, 1
    %s20 = ssub.s32 %s12, %s19
    %p21 = scmp.eq.s32.totalorder %s20, 0
    %s23 = sadd.s32 %s22, 1
    %s24 = scalar_select %p21, %s22, %s23
    %p27 = pneg %p21
    %p28 = scmp.eq.s32.totalorder %s12, 2
    %p29 = por %p27, %p28
    %p30 = scmp.ne.s32.totalorder %s22, %s25
    %p31 = scmp.eq.s32.totalorder %s12, 0
    %p32 = por %p30, %p31
    %p33 = scmp.ne.s32.totalorder %s22, %s25
    %p34 = scmp.eq.s32.totalorder %s17, 2
    %p35 = por %p33, %p34
    %p36 = scmp.ne.s32.totalorder %s25, %s26
    %p37 = scmp.eq.s32.totalorder %s17, 0
    %p38 = por %p36, %p37
    %p39 = scmp.ne.s32.totalorder %s25, %s26
    %p40 = scmp.eq.s32.totalorder %s18, 2
    %p41 = por %p39, %p40
    %p43 = scmp.ne.s32.totalorder %s26, %s42
    %p44 = scmp.eq.s32.totalorder %s18, 0
    %p45 = por %p43, %p44
    %s47 = sadd.s32 %s46, 1
    %p50 = scmp.eq.s32.totalorder %s12, 2
    %p51 = scmp.ne.s32.totalorder %s46, %s48
    %p52 = scmp.eq.s32.totalorder %s12, 0
    %p53 = por %p51, %p52
    %p54 = scmp.ne.s32.totalorder %s46, %s48
    %p55 = scmp.eq.s32.totalorder %s17, 2
    %p56 = por %p54, %p55
    %p57 = scmp.ne.s32.totalorder %s48, %s49
    %p58 = scmp.eq.s32.totalorder %s17, 0
    %p59 = por %p57, %p58
    %p60 = scmp.ne.s32.totalorder %s48, %s49
    %p61 = scmp.eq.s32.totalorder %s18, 2
    %p62 = por %p60, %p61
    %p64 = scmp.ne.s32.totalorder %s49, %s63
    %p65 = scmp.eq.s32.totalorder %s18, 0
    %p66 = por %p64, %p65
    %s68 = sadd.s32 %s67, 1
    %p71 = scmp.eq.s32.totalorder %s12, 2
    %p72 = scmp.ne.s32.totalorder %s67, %s69
    %p73 = scmp.eq.s32.totalorder %s12, 0
    %p74 = por %p72, %p73
    %p75 = scmp.ne.s32.totalorder %s67, %s69
    %p76 = scmp.eq.s32.totalorder %s17, 2
    %p77 = por %p75, %p76
    %p78 = scmp.ne.s32.totalorder %s69, %s70
    %p79 = scmp.eq.s32.totalorder %s17, 0
    %p80 = por %p78, %p79
    %p81 = scmp.ne.s32.totalorder %s69, %s70
    %p82 = scmp.eq.s32.totalorder %s18, 2
    %p83 = por %p81, %p82
    %p85 = scmp.ne.s32.totalorder %s70, %s84
    %p86 = scmp.eq.s32.totalorder %s18, 0
    %p87 = por %p85, %p86
    %s89 = sadd.s32 %s88, 1
    %p92 = scmp.eq.s32.totalorder %s12, 2
    %p93 = scmp.ne.s32.totalorder %s88, %s90
    %p94 = scmp.eq.s32.totalorder %s12, 0
    %p95 = por %p93, %p94
    %p96 = scmp.ne.s32.totalorder %s88, %s90
    %p97 = scmp.eq.s32.totalorder %s17, 2
    %p98 = por %p96, %p97
    %p99 = scmp.ne.s32.totalorder %s90, %s91
    %p100 = scmp.eq.s32.totalorder %s17, 0
    %p101 = por %p99, %p100
    %p102 = scmp.ne.s32.totalorder %s90, %s91
    %p103 = scmp.eq.s32.totalorder %s18, 2
    %p104 = por %p102, %p103
    %p106 = scmp.ne.s32.totalorder %s91, %s105
    %p107 = scmp.eq.s32.totalorder %s18, 0
    %p108 = por %p106, %p107
    %s110 = sadd.s32 %s109, 1
    %p113 = scmp.eq.s32.totalorder %s12, 2
    %p114 = scmp.ne.s32.totalorder %s109, %s111
    %p115 = scmp.eq.s32.totalorder %s12, 0
    %p116 = por %p114, %p115
    %p117 = scmp.ne.s32.totalorder %s109, %s111
    %p118 = scmp.eq.s32.totalorder %s17, 2
    %p119 = por %p117, %p118
    %p120 = scmp.ne.s32.totalorder %s111, %s112
    %p121 = scmp.eq.s32.totalorder %s17, 0
    %p122 = por %p120, %p121
    %p123 = scmp.ne.s32.totalorder %s111, %s112
    %p124 = scmp.eq.s32.totalorder %s18, 2
    %p125 = por %p123, %p124
    %p127 = scmp.ne.s32.totalorder %s112, %s126
    %p128 = scmp.eq.s32.totalorder %s18, 0
    %p129 = por %p127, %p128
    %s131 = sadd.s32 %s130, 1
    %p134 = scmp.eq.s32.totalorder %s12, 2
    %p135 = scmp.ne.s32.totalorder %s130, %s132
    %p136 = scmp.eq.s32.totalorder %s12, 0
    %p137 = por %p135, %p136
    %p138 = scmp.ne.s32.totalorder %s130, %s132
    %p139 = scmp.eq.s32.totalorder %s17, 2
    %p140 = por %p138, %p139
    %p141 = scmp.ne.s32.totalorder %s132, %s133
    %p142 = scmp.eq.s32.totalorder %s17, 0
    %p143 = por %p141, %p142
    %p144 = scmp.ne.s32.totalorder %s132, %s133
    %p145 = scmp.eq.s32.totalorder %s18, 2
    %p146 = por %p144, %p145
    %p148 = scmp.ne.s32.totalorder %s133, %s147
    %p149 = scmp.eq.s32.totalorder %s18, 0
    %p150 = por %p148, %p149
    %s151 = ssub.s32 %s12, %s19
    %p152 = scmp.eq.s32.totalorder %s151, 0
    %s154 = sadd.s32 %s153, 1
    %s155 = scalar_select %p152, %s153, %s154
    %p158 = pneg %p152
    %p159 = scmp.eq.s32.totalorder %s12, 2
    %p160 = por %p158, %p159
    %p161 = scmp.ne.s32.totalorder %s153, %s156
    %p162 = scmp.eq.s32.totalorder %s12, 0
    %p163 = por %p161, %p162
    %p164 = scmp.ne.s32.totalorder %s153, %s156
    %p165 = scmp.eq.s32.totalorder %s17, 2
    %p166 = por %p164, %p165
    %p167 = scmp.ne.s32.totalorder %s156, %s157
    %p168 = scmp.eq.s32.totalorder %s17, 0
    %p169 = por %p167, %p168
    %p170 = scmp.ne.s32.totalorder %s156, %s157
    %p171 = scmp.eq.s32.totalorder %s18, 2
    %p172 = por %p170, %p171
    %p174 = scmp.ne.s32.totalorder %s157, %s173
    %p175 = scmp.eq.s32.totalorder %s18, 0
    %p176 = por %p174, %p175
    %p177 = scmp.le.s32.totalorder 1, %s12
    %p178 = scmp.lt.s32.totalorder %s12, 4
    %p179 = pnand %p177, %p178
    %p180 = pneg %p179
    // Predicated region
    $region9: #{mlp_forward.1} parent=5 // pred_check
      _
    $region10: #{mlp_forward.1} parent=5 // pred_check_branch
      %182 = sbr.rel (%p179) target = $region12
    $region11: #{mlp_forward.1} parent=5 // pred_region
      %s183 = ssub.s32 %s12, 1
      // Predicated region
      $region13: #{mlp_forward.1} parent=11 // pred_check
        %p184 = pneg %p59
      $region14: #{mlp_forward.1} parent=11 // pred_check_branch
        %186 = sbr.rel (%p184) target = $region16
      $region15: #{mlp_forward.1} parent=11 // pred_region
        _
      $region16: #{mlp_forward.1} parent=11 // pred_fallthru
        _
      // Predicated region
      $region17: #{mlp_forward.1} parent=11 // pred_check
        %p187 = pneg %p80
      $region18: #{mlp_forward.1} parent=11 // pred_check_branch
        %189 = sbr.rel (%p187) target = $region20
      $region19: #{mlp_forward.1} parent=11 // pred_region
        _
      $region20: #{mlp_forward.1} parent=11 // pred_fallthru
        _
      // Predicated region
      $region21: #{mlp_forward.1} parent=11 // pred_check
        %p190 = pneg %p101
      $region22: #{mlp_forward.1} parent=11 // pred_check_branch
        %192 = sbr.rel (%p190) target = $region24
      $region23: #{mlp_forward.1} parent=11 // pred_region
        _
      $region24: #{mlp_forward.1} parent=11 // pred_fallthru
        _
      // Predicated region
      $region25: #{mlp_forward.1} parent=11 // pred_check
        %p193 = pneg %p122
      $region26: #{mlp_forward.1} parent=11 // pred_check_branch
        %195 = sbr.rel (%p193) target = $region28
      $region27: #{mlp_forward.1} parent=11 // pred_region
        _
      $region28: #{mlp_forward.1} parent=11 // pred_fallthru
        _
      // Predicated region
      $region29: #{mlp_forward.1} parent=11 // pred_check
        %p196 = pneg %p143
      $region30: #{mlp_forward.1} parent=11 // pred_check_branch
        %198 = sbr.rel (%p196) target = $region32
      $region31: #{mlp_forward.1} parent=11 // pred_region
        _
      $region32: #{mlp_forward.1} parent=11 // pred_fallthru
        _
    $region12: #{mlp_forward.1} parent=5 // pred_fallthru
      _
    %p199 = scmp.lt.s32.totalorder %s12, 3
    // Predicated region
    $region33: #{mlp_forward.1} parent=5 // pred_check
      %p200 = pneg %p199
    $region34: #{mlp_forward.1} parent=5 // pred_check_branch
      %202 = sbr.rel (%p200) target = $region36
    $region35: #{mlp_forward.1} parent=5 // pred_region
      // Predicated region
      $region37: #{mlp_forward.1} parent=35 // pred_check
        %p203 = pneg %p32
      $region38: #{mlp_forward.1} parent=35 // pred_check_branch
        %205 = sbr.rel (%p203) target = $region40
      $region39: #{mlp_forward.1} parent=35 // pred_region
        %p206 = scmp.lt.s32.totalorder %s12, 2
        %s207 = scalar_select %p206, %s12, 2
        %s208 = smul.addr %s207, 7
        %s209 = smul.addr %s208, 4
        %s210 = scalar_lea.vmem %s0, %s209
      $region40: #{mlp_forward.1} parent=35 // pred_fallthru
        _
    $region36: #{mlp_forward.1} parent=5 // pred_fallthru
      _
    %p211 = scmp.le.s32.totalorder 1, %s12
    %p212 = scmp.lt.s32.totalorder %s12, 4
    %p213 = pnand %p211, %p212
    %p214 = pneg %p213
    // Predicated region
    $region41: #{mlp_forward.1} parent=5 // pred_check
      _
    $region42: #{mlp_forward.1} parent=5 // pred_check_branch
      %216 = sbr.rel (%p213) target = $region44
    $region43: #{mlp_forward.1} parent=5 // pred_region
      %s217 = ssub.s32 %s12, 1
      %p218 = scmp.lt.s32.totalorder %s17, 2
      %s219 = scalar_select %p218, %s17, 2
      %s220 = smul.addr %s219, 7
      %s221 = smul.addr %s220, 4
      %s222 = scalar_lea.vmem %s0, %s221
      %p223 = pneg %p38
      %p224 = pneg %p35
      %p225 = pneg %p59
      %p226 = pneg %p56
      %p227 = pneg %p80
      %p228 = pneg %p77
      %p229 = pneg %p101
      %p230 = pneg %p98
      %p231 = pneg %p122
      %p232 = pneg %p119
      %p233 = pneg %p143
      %p234 = pneg %p140
      %p235 = pneg %p169
      %p236 = pneg %p166
      %p237 = scmp.lt.s32.totalorder %s17, 2
      %s238 = scalar_select %p237, %s17, 2
      %s239 = smul.addr %s238, 8
      %s240 = scalar_lea.vmem %s6, %s239
      %p241 = scmp.lt.s32.totalorder %s17, 2
      %s242 = scalar_select %p241, %s17, 2
      %s243 = smul.addr %s242, 7
      %s244 = smul.addr %s243, 4
      %s245 = scalar_lea.vmem %s0, %s244
      %p246 = scmp.lt.s32.totalorder %s17, 2
      %s247 = scalar_select %p246, %s17, 2
      %s248 = smul.addr %s247, 8
      %s249 = scalar_lea.vmem %s6, %s248
      %v251 = vld [vmem:[%s5] sm:$0xf]
      %v252 = vld [vmem:[%s245] sm:$0xff]
      %v253 = vld [vmem:[%s245 + $0x8] sm:$0xff]
      %v254 = vld [vmem:[%s245 + $0x10] sm:$0xff]
      %v255 = vld [vmem:[%s245 + $0x18] sm:$0xf]
      %v256 = vld [vmem:[%s1] sm:$0xf]
      %v257 = vld [vmem:[%s1 + $0x4] sm:$0xf]
      %v258 = vld [vmem:[%s1 + $0x8] sm:$0xf]
      %v259 = vld [vmem:[%s1 + $0xc] sm:$0xf]
      %v260 = vld [vmem:[%s1 + $0x10] sm:$0xf]
      %v261 = vld [vmem:[%s1 + $0x14] sm:$0xf]
      %v262 = vld [vmem:[%s1 + $0x18] sm:$0xf]
      %v263 = vld [vmem:[%s1 + $0x1c] sm:$0xf]
      %v264 = vld [vmem:[%s1 + $0x20] sm:$0xf]
      %v265 = vld [vmem:[%s1 + $0x24] sm:$0xf]
      %v266 = vld [vmem:[%s1 + $0x28] sm:$0xf]
      %v267 = vld [vmem:[%s1 + $0x2c] sm:$0xf]
      %v268 = vld [vmem:[%s1 + $0x30] sm:$0xf]
      %v269 = vld [vmem:[%s1 + $0x34] sm:$0xf]
      %v270 = vld [vmem:[%s1 + $0x38] sm:$0xf]
      %v271 = vld [vmem:[%s1 + $0x3c] sm:$0xf]
      %v272 = vld [vmem:[%s1 + $0x40] sm:$0xf]
      %v273 = vld [vmem:[%s1 + $0x44] sm:$0xf]
      %v274 = vld [vmem:[%s1 + $0x48] sm:$0xf]
      %v275 = vld [vmem:[%s1 + $0x4c] sm:$0xf]
      %v276 = vld [vmem:[%s1 + $0x50] sm:$0xf]
      %v277 = vld [vmem:[%s1 + $0x54] sm:$0xf]
      %v278 = vld [vmem:[%s1 + $0x58] sm:$0xf]
      %v279 = vld [vmem:[%s1 + $0x5c] sm:$0xf]
      %v280 = vld [vmem:[%s1 + $0x60] sm:$0xf]
      %v281 = vld [vmem:[%s1 + $0x64] sm:$0xf]
      %v282 = vld [vmem:[%s1 + $0x68] sm:$0xf]
      %v283 = vld [vmem:[%s1 + $0x6c] sm:$0xf]
      %v284 = vld [vmem:[%s1 + $0x70] sm:$0xf]
      %v285 = vld [vmem:[%s1 + $0x74] sm:$0xf]
      %v286 = vld [vmem:[%s1 + $0x78] sm:$0xf]
      %v287 = vld [vmem:[%s1 + $0x7c] sm:$0xf]
      %v288 = vld [vmem:[%s1 + $0x80] sm:$0xf]
      %v289 = vld [vmem:[%s1 + $0x84] sm:$0xf]
      %v290 = vld [vmem:[%s1 + $0x88] sm:$0xf]
      %v291 = vld [vmem:[%s1 + $0x8c] sm:$0xf]
      %v292 = vld [vmem:[%s1 + $0x90] sm:$0xf]
      %v293 = vld [vmem:[%s1 + $0x94] sm:$0xf]
      %v294 = vld [vmem:[%s1 + $0x98] sm:$0xf]
      %v295 = vld [vmem:[%s1 + $0x9c] sm:$0xf]
      %v296 = vld [vmem:[%s1 + $0xa0] sm:$0xf]
      %v297 = vld [vmem:[%s1 + $0xa4] sm:$0xf]
      %v298 = vld [vmem:[%s1 + $0xa8] sm:$0xf]
      %v299 = vld [vmem:[%s1 + $0xac] sm:$0xf]
      %v300 = vld [vmem:[%s1 + $0xb0] sm:$0xf]
      %v301 = vld [vmem:[%s1 + $0xb4] sm:$0xf]
      %v302 = vld [vmem:[%s1 + $0xb8] sm:$0xf]
      %v303 = vld [vmem:[%s1 + $0xbc] sm:$0xf]
      %v304 = vld [vmem:[%s1 + $0xc0] sm:$0xf]
      %v305 = vld [vmem:[%s1 + $0xc4] sm:$0xf]
      %v306 = vld [vmem:[%s1 + $0xc8] sm:$0xf]
      %v307 = vld [vmem:[%s1 + $0xcc] sm:$0xf]
      %v308 = vld [vmem:[%s1 + $0xd0] sm:$0xf]
      %v309 = vld [vmem:[%s1 + $0xd4] sm:$0xf]
      %v310 = vld [vmem:[%s1 + $0xd8] sm:$0xf]
      %v311 = vld [vmem:[%s1 + $0xdc] sm:$0xf]
      %v312 = vld [vmem:[%s1 + $0xe0] sm:$0xf]
      %v313 = vld [vmem:[%s1 + $0xe4] sm:$0xf]
      %v314 = vld [vmem:[%s1 + $0xe8] sm:$0xf]
      %v315 = vld [vmem:[%s1 + $0xec] sm:$0xf]
      %v316 = vld [vmem:[%s1 + $0xf0] sm:$0xf]
      %v317 = vld [vmem:[%s1 + $0xf4] sm:$0xf]
      %v318 = vld [vmem:[%s1 + $0xf8] sm:$0xf]
      %v319 = vld [vmem:[%s1 + $0xfc] sm:$0xf]
      %v320 = vld [vmem:[%s1 + $0x100] sm:$0xf]
      %v321 = vld [vmem:[%s1 + $0x104] sm:$0xf]
      %v322 = vld [vmem:[%s1 + $0x108] sm:$0xf]
      %v323 = vld [vmem:[%s1 + $0x10c] sm:$0xf]
      %v324 = vld [vmem:[%s1 + $0x110] sm:$0xf]
      %v325 = vld [vmem:[%s1 + $0x114] sm:$0xf]
      %v326 = vld [vmem:[%s1 + $0x118] sm:$0xf]
      %v327 = vld [vmem:[%s1 + $0x11c] sm:$0xf]
      %v328 = vld [vmem:[%s1 + $0x120] sm:$0xf]
      %v329 = vld [vmem:[%s1 + $0x124] sm:$0xf]
      %v330 = vld [vmem:[%s1 + $0x128] sm:$0xf]
      %v331 = vld [vmem:[%s1 + $0x12c] sm:$0xf]
      %v332 = vld [vmem:[%s1 + $0x130] sm:$0xf]
      %v333 = vld [vmem:[%s1 + $0x134] sm:$0xf]
      %v334 = vld [vmem:[%s1 + $0x138] sm:$0xf]
      %v335 = vld [vmem:[%s1 + $0x13c] sm:$0xf]
      %v336 = vld [vmem:[%s1 + $0x140] sm:$0xf]
      %v337 = vld [vmem:[%s1 + $0x144] sm:$0xf]
      %v338 = vld [vmem:[%s1 + $0x148] sm:$0xf]
      %v339 = vld [vmem:[%s1 + $0x14c] sm:$0xf]
      %v340 = vld [vmem:[%s1 + $0x150] sm:$0xf]
      %v341 = vld [vmem:[%s1 + $0x154] sm:$0xf]
      %v342 = vld [vmem:[%s1 + $0x158] sm:$0xf]
      %v343 = vld [vmem:[%s1 + $0x15c] sm:$0xf]
      %v344 = vld [vmem:[%s1 + $0x160] sm:$0xf]
      %v345 = vld [vmem:[%s1 + $0x164] sm:$0xf]
      %v346 = vld [vmem:[%s1 + $0x168] sm:$0xf]
      %v347 = vld [vmem:[%s1 + $0x16c] sm:$0xf]
      %v348 = vld [vmem:[%s1 + $0x170] sm:$0xf]
      %v349 = vld [vmem:[%s1 + $0x174] sm:$0xf]
      %v350 = vld [vmem:[%s1 + $0x178] sm:$0xf]
      %v351 = vld [vmem:[%s1 + $0x17c] sm:$0xf]
      %v352 = vld [vmem:[%s1 + $0x180] sm:$0xf]
      %v353 = vld [vmem:[%s1 + $0x184] sm:$0xf]
      %v354 = vlaneseq
      %v355 = vshrl.u32 %v354, 7
      %v356 = vsub.s32 0, %v355
      %v357 = vrot.slane %v251, %v356
      %v362 = vunpack.c.l.b16 %v252
      %v363 = vunpack.c.h.b16 %v252
      %v364 = vunpack.c.l.b16 %v253
      %v365 = vunpack.c.h.b16 %v253
      %v366 = vunpack.c.l.b16 %v254
      %v367 = vunpack.c.h.b16 %v254
      %v368 = vunpack.c.l.b16 %v255
      %v369 = vpack.c.b16 %v362, %v362
      %v370 = vpack.c.b16 %v363, %v363
      %v371 = vpack.c.b16 %v364, %v364
      %v372 = vpack.c.b16 %v365, %v365
      %v373 = vpack.c.b16 %v366, %v366
      %v374 = vpack.c.b16 %v367, %v367
      %v375 = vpack.c.b16 %v368, %v368
      %v480 = vunpack.c.l.b16 %v256
      %v481 = vunpack.c.l.b16 %v257
      %v482 = vunpack.c.l.b16 %v258
      %v483 = vunpack.c.l.b16 %v259
      %v484 = vunpack.c.l.b16 %v260
      %v485 = vunpack.c.l.b16 %v261
      %v486 = vunpack.c.l.b16 %v262
      %v487 = vunpack.c.l.b16 %v263
      %v488 = vunpack.c.l.b16 %v264
      %v489 = vunpack.c.l.b16 %v265
      %v490 = vunpack.c.l.b16 %v266
      %v491 = vunpack.c.l.b16 %v267
      %v492 = vunpack.c.l.b16 %v268
      %v493 = vunpack.c.l.b16 %v269
      %v494 = vunpack.c.l.b16 %v270
      %v495 = vunpack.c.l.b16 %v271
      %v496 = vunpack.c.l.b16 %v272
      %v497 = vunpack.c.l.b16 %v273
      %v498 = vunpack.c.l.b16 %v274
      %v499 = vunpack.c.l.b16 %v275
      %v500 = vunpack.c.l.b16 %v276
      %v501 = vunpack.c.l.b16 %v277
      %v502 = vunpack.c.l.b16 %v278
      %v503 = vunpack.c.l.b16 %v279
      %v504 = vunpack.c.l.b16 %v280
      %v505 = vunpack.c.l.b16 %v281
      %v506 = vunpack.c.l.b16 %v282
      %v507 = vunpack.c.l.b16 %v283
      %v508 = vunpack.c.l.b16 %v284
      %v509 = vunpack.c.l.b16 %v285
      %v510 = vunpack.c.l.b16 %v286
      %v511 = vunpack.c.l.b16 %v287
      %v512 = vunpack.c.l.b16 %v288
      %v513 = vunpack.c.l.b16 %v289
      %v514 = vunpack.c.l.b16 %v290
      %v515 = vunpack.c.l.b16 %v291
      %v516 = vunpack.c.l.b16 %v292
      %v517 = vunpack.c.l.b16 %v293
      %v518 = vunpack.c.l.b16 %v294
      %v519 = vunpack.c.l.b16 %v295
      %v520 = vunpack.c.l.b16 %v296
      %v521 = vunpack.c.l.b16 %v297
      %v522 = vunpack.c.l.b16 %v298
      %v523 = vunpack.c.l.b16 %v299
      %v524 = vunpack.c.l.b16 %v300
      %v525 = vunpack.c.l.b16 %v301
      %v526 = vunpack.c.l.b16 %v302
      %v527 = vunpack.c.l.b16 %v303
      %v528 = vunpack.c.l.b16 %v304
      %v529 = vunpack.c.l.b16 %v305
      %v530 = vunpack.c.l.b16 %v306
      %v531 = vunpack.c.l.b16 %v307
      %v532 = vunpack.c.l.b16 %v308
      %v533 = vunpack.c.l.b16 %v309
      %v534 = vunpack.c.l.b16 %v310
      %v535 = vunpack.c.l.b16 %v311
      %v536 = vunpack.c.l.b16 %v312
      %v537 = vunpack.c.l.b16 %v313
      %v538 = vunpack.c.l.b16 %v314
      %v539 = vunpack.c.l.b16 %v315
      %v540 = vunpack.c.l.b16 %v316
      %v541 = vunpack.c.l.b16 %v317
      %v542 = vunpack.c.l.b16 %v318
      %v543 = vunpack.c.l.b16 %v319
      %v544 = vunpack.c.l.b16 %v320
      %v545 = vunpack.c.l.b16 %v321
      %v546 = vunpack.c.l.b16 %v322
      %v547 = vunpack.c.l.b16 %v323
      %v548 = vunpack.c.l.b16 %v324
      %v549 = vunpack.c.l.b16 %v325
      %v550 = vunpack.c.l.b16 %v326
      %v551 = vunpack.c.l.b16 %v327
      %v552 = vunpack.c.l.b16 %v328
      %v553 = vunpack.c.l.b16 %v329
      %v554 = vunpack.c.l.b16 %v330
      %v555 = vunpack.c.l.b16 %v331
      %v556 = vunpack.c.l.b16 %v332
      %v557 = vunpack.c.l.b16 %v333
      %v558 = vunpack.c.l.b16 %v334
      %v559 = vunpack.c.l.b16 %v335
      %v560 = vunpack.c.l.b16 %v336
      %v561 = vunpack.c.l.b16 %v337
      %v562 = vunpack.c.l.b16 %v338
      %v563 = vunpack.c.l.b16 %v339
      %v564 = vunpack.c.l.b16 %v340
      %v565 = vunpack.c.l.b16 %v341
      %v566 = vunpack.c.l.b16 %v342
      %v567 = vunpack.c.l.b16 %v343
      %v568 = vunpack.c.l.b16 %v344
      %v569 = vunpack.c.l.b16 %v345
      %v570 = vunpack.c.l.b16 %v346
      %v571 = vunpack.c.l.b16 %v347
      %v572 = vunpack.c.l.b16 %v348
      %v573 = vunpack.c.l.b16 %v349
      %v574 = vunpack.c.l.b16 %v350
      %v575 = vunpack.c.l.b16 %v351
      %v576 = vunpack.c.l.b16 %v352
      %v577 = vunpack.c.l.b16 %v353
      %v578 = vpack.c.b16 %v481, %v480
      %v579 = vpack.c.b16 %v483, %v482
      %v580 = vpack.c.b16 %v485, %v484
      %v581 = vpack.c.b16 %v487, %v486
      %v582 = vpack.c.b16 %v489, %v488
      %v583 = vpack.c.b16 %v491, %v490
      %v584 = vpack.c.b16 %v493, %v492
      %v585 = vpack.c.b16 %v495, %v494
      %v586 = vpack.c.b16 %v497, %v496
      %v587 = vpack.c.b16 %v499, %v498
      %v588 = vpack.c.b16 %v501, %v500
      %v589 = vpack.c.b16 %v503, %v502
      %v590 = vpack.c.b16 %v505, %v504
      %v591 = vpack.c.b16 %v507, %v506
      %v592 = vpack.c.b16 %v509, %v508
      %v593 = vpack.c.b16 %v511, %v510
      %v594 = vpack.c.b16 %v513, %v512
      %v595 = vpack.c.b16 %v515, %v514
      %v596 = vpack.c.b16 %v517, %v516
      %v597 = vpack.c.b16 %v519, %v518
      %v598 = vpack.c.b16 %v521, %v520
      %v599 = vpack.c.b16 %v523, %v522
      %v600 = vpack.c.b16 %v525, %v524
      %v601 = vpack.c.b16 %v527, %v526
      %v602 = vpack.c.b16 %v529, %v528
      %v603 = vpack.c.b16 %v531, %v530
      %v604 = vpack.c.b16 %v533, %v532
      %v605 = vpack.c.b16 %v535, %v534
      %v606 = vpack.c.b16 %v537, %v536
      %v607 = vpack.c.b16 %v539, %v538
      %v608 = vpack.c.b16 %v541, %v540
      %v609 = vpack.c.b16 %v543, %v542
      %v610 = vpack.c.b16 %v545, %v544
      %v611 = vpack.c.b16 %v547, %v546
      %v612 = vpack.c.b16 %v549, %v548
      %v613 = vpack.c.b16 %v551, %v550
      %v614 = vpack.c.b16 %v553, %v552
      %v615 = vpack.c.b16 %v555, %v554
      %v616 = vpack.c.b16 %v557, %v556
      %v617 = vpack.c.b16 %v559, %v558
      %v618 = vpack.c.b16 %v561, %v560
      %v619 = vpack.c.b16 %v563, %v562
      %v620 = vpack.c.b16 %v565, %v564
      %v621 = vpack.c.b16 %v567, %v566
      %v622 = vpack.c.b16 %v569, %v568
      %v623 = vpack.c.b16 %v571, %v570
      %v624 = vpack.c.b16 %v573, %v572
      %v625 = vpack.c.b16 %v575, %v574
      %v626 = vpack.c.b16 %v577, %v576
      %vm676 = vcmask 130048
      %v678 = vsel %vm676, %v375, 0
      %680 = vmatprep.subr.bf16.mxu0 0
      %681 = vmatpush1.bf16.msra.mxu0 %v578
      %682 = vmatprep.subr.bf16.mxu0 0
      %683 = vmatpush1.bf16.msra.mxu0 %v579
      %684 = vmatprep.subr.bf16.mxu0 0
      %685 = vmatpush1.bf16.msra.mxu0 %v580
      %686 = vmatprep.subr.bf16.mxu0 0
      %687 = vmatpush1.bf16.msra.mxu0 %v581
      %688 = vmatprep.subr.bf16.mxu0 0
      %689 = vmatpush1.bf16.msra.mxu0 %v582
      %690 = vmatprep.subr.bf16.mxu0 0
      %691 = vmatpush1.bf16.msra.mxu0 %v583
      %692 = vmatprep.subr.bf16.mxu0 0
      %693 = vmatpush1.bf16.msra.mxu0 %v584
      %694 = vmatprep.subr.bf16.mxu0 0
      %695 = vmatpush1.bf16.msra.mxu0 %v585
      %696 = vmatprep.subr.bf16.mxu0 0
      %697 = vmatpush1.bf16.msra.mxu0 %v586
      %698 = vmatprep.subr.bf16.mxu0 0
      %699 = vmatpush1.bf16.msra.mxu0 %v587
      %700 = vmatprep.subr.bf16.mxu0 0
      %701 = vmatpush1.bf16.msra.mxu0 %v588
      %702 = vmatprep.subr.bf16.mxu0 0
      %703 = vmatpush1.bf16.msra.mxu0 %v589
      %704 = vmatprep.subr.bf16.mxu0 0
      %705 = vmatpush1.bf16.msra.mxu0 %v590
      %706 = vmatprep.subr.bf16.mxu0 0
      %707 = vmatpush1.bf16.msra.mxu0 %v591
      %708 = vmatprep.subr.bf16.mxu0 0
      %709 = vmatpush1.bf16.msra.mxu0 %v592
      %710 = vmatprep.subr.bf16.mxu0 0
      %711 = vmatpush1.bf16.msra.mxu0 %v593
      %712 = vmatprep.mubr.bf16.mxu0 %v370
      %713 = vmatmul.mubr.bf16.gmra.mrb[0].mxu0 %v369
      %v714 = vpop.f32.mrb[0].mxu0
      %v715 = vadd.f32 %v357, %v714
      %v716 = vpop.f32.mrb[0].mxu0
      %v717 = vpop.f32.mrb[0].mxu0
      %v718 = vpop.f32.mrb[0].mxu0
      %719 = vdwg.mxu0
      %720 = vmatprep.subr.bf16.mxu0 0
      %721 = vmatpush1.bf16.msra.mxu0 %v594
      %722 = vmatprep.subr.bf16.mxu0 0
      %723 = vmatpush1.bf16.msra.mxu0 %v595
      %724 = vmatprep.subr.bf16.mxu0 0
      %725 = vmatpush1.bf16.msra.mxu0 %v596
      %726 = vmatprep.subr.bf16.mxu0 0
      %727 = vmatpush1.bf16.msra.mxu0 %v597
      %728 = vmatprep.subr.bf16.mxu0 0
      %729 = vmatpush1.bf16.msra.mxu0 %v598
      %730 = vmatprep.subr.bf16.mxu0 0
      %731 = vmatpush1.bf16.msra.mxu0 %v599
      %732 = vmatprep.subr.bf16.mxu0 0
      %733 = vmatpush1.bf16.msra.mxu0 %v600
      %734 = vmatprep.subr.bf16.mxu0 0
      %735 = vmatpush1.bf16.msra.mxu0 %v601
      %736 = vmatprep.subr.bf16.mxu0 0
      %737 = vmatpush1.bf16.msra.mxu0 %v602
      %738 = vmatprep.subr.bf16.mxu0 0
      %739 = vmatpush1.bf16.msra.mxu0 %v603
      %740 = vmatprep.subr.bf16.mxu0 0
      %741 = vmatpush1.bf16.msra.mxu0 %v604
      %742 = vmatprep.subr.bf16.mxu0 0
      %743 = vmatpush1.bf16.msra.mxu0 %v605
      %744 = vmatprep.subr.bf16.mxu0 0
      %745 = vmatpush1.bf16.msra.mxu0 %v606
      %746 = vmatprep.subr.bf16.mxu0 0
      %747 = vmatpush1.bf16.msra.mxu0 %v607
      %748 = vmatprep.subr.bf16.mxu0 0
      %749 = vmatpush1.bf16.msra.mxu0 %v608
      %750 = vmatprep.subr.bf16.mxu0 0
      %751 = vmatpush1.bf16.msra.mxu0 %v609
      %752 = vmatprep.mubr.bf16.mxu0 %v372
      %753 = vmatmul.mubr.bf16.gmra.mrb[0].mxu0 %v371
      %v754 = vpop.f32.mrb[0].mxu0
      %v755 = vadd.f32 %v715, %v754
      %v756 = vpop.f32.mrb[0].mxu0
      %v757 = vpop.f32.mrb[0].mxu0
      %v758 = vpop.f32.mrb[0].mxu0
      %759 = vdwg.mxu0
      %760 = vmatprep.subr.bf16.mxu0 0
      %761 = vmatpush1.bf16.msra.mxu0 %v610
      %762 = vmatprep.subr.bf16.mxu0 0
      %763 = vmatpush1.bf16.msra.mxu0 %v611
      %764 = vmatprep.subr.bf16.mxu0 0
      %765 = vmatpush1.bf16.msra.mxu0 %v612
      %766 = vmatprep.subr.bf16.mxu0 0
      %767 = vmatpush1.bf16.msra.mxu0 %v613
      %768 = vmatprep.subr.bf16.mxu0 0
      %769 = vmatpush1.bf16.msra.mxu0 %v614
      %770 = vmatprep.subr.bf16.mxu0 0
      %771 = vmatpush1.bf16.msra.mxu0 %v615
      %772 = vmatprep.subr.bf16.mxu0 0
      %773 = vmatpush1.bf16.msra.mxu0 %v616
      %774 = vmatprep.subr.bf16.mxu0 0
      %775 = vmatpush1.bf16.msra.mxu0 %v617
      %776 = vmatprep.subr.bf16.mxu0 0
      %777 = vmatpush1.bf16.msra.mxu0 %v618
      %778 = vmatprep.subr.bf16.mxu0 0
      %779 = vmatpush1.bf16.msra.mxu0 %v619
      %780 = vmatprep.subr.bf16.mxu0 0
      %781 = vmatpush1.bf16.msra.mxu0 %v620
      %782 = vmatprep.subr.bf16.mxu0 0
      %783 = vmatpush1.bf16.msra.mxu0 %v621
      %784 = vmatprep.subr.bf16.mxu0 0
      %785 = vmatpush1.bf16.msra.mxu0 %v622
      %786 = vmatprep.subr.bf16.mxu0 0
      %787 = vmatpush1.bf16.msra.mxu0 %v623
      %788 = vmatprep.subr.bf16.mxu0 0
      %789 = vmatpush1.bf16.msra.mxu0 %v624
      %790 = vmatprep.subr.bf16.mxu0 0
      %791 = vmatpush1.bf16.msra.mxu0 %v625
      %792 = vmatprep.mubr.bf16.mxu0 %v374
      %793 = vmatmul.mubr.bf16.gmra.mrb[0].mxu0 %v373
      %v794 = vpop.f32.mrb[0].mxu0
      %v795 = vadd.f32 %v755, %v794
      %v796 = vpop.f32.mrb[0].mxu0
      %v797 = vpop.f32.mrb[0].mxu0
      %v798 = vpop.f32.mrb[0].mxu0
      %799 = vdwg.mxu0
      %800 = vmatprep.subr.bf16.mxu0 0
      %801 = vmatpush1.bf16.msra.mxu0 %v626
      %802 = vmatprep.subr.bf16.mxu0 0
      %803 = vmatpush1.bf16.msra.mxu0 0
      %804 = vmatprep.subr.bf16.mxu0 0
      %805 = vmatpush1.bf16.msra.mxu0 0
      %806 = vmatprep.subr.bf16.mxu0 0
      %807 = vmatpush1.bf16.msra.mxu0 0
      %808 = vmatprep.subr.bf16.mxu0 0
      %809 = vmatpush1.bf16.msra.mxu0 0
      %810 = vmatprep.subr.bf16.mxu0 0
      %811 = vmatpush1.bf16.msra.mxu0 0
      %812 = vmatprep.subr.bf16.mxu0 0
      %813 = vmatpush1.bf16.msra.mxu0 0
      %814 = vmatprep.subr.bf16.mxu0 0
      %815 = vmatpush1.bf16.msra.mxu0 0
      %816 = vmatprep.subr.bf16.mxu0 0
      %817 = vmatpush1.bf16.msra.mxu0 0
      %818 = vmatprep.subr.bf16.mxu0 0
      %819 = vmatpush1.bf16.msra.mxu0 0
      %820 = vmatprep.subr.bf16.mxu0 0
      %821 = vmatpush1.bf16.msra.mxu0 0
      %822 = vmatprep.subr.bf16.mxu0 0
      %823 = vmatpush1.bf16.msra.mxu0 0
      %824 = vmatprep.subr.bf16.mxu0 0
      %825 = vmatpush1.bf16.msra.mxu0 0
      %826 = vmatprep.subr.bf16.mxu0 0
      %827 = vmatpush1.bf16.msra.mxu0 0
      %828 = vmatprep.subr.bf16.mxu0 0
      %829 = vmatpush1.bf16.msra.mxu0 0
      %830 = vmatprep.subr.bf16.mxu0 0
      %831 = vmatpush1.bf16.msra.mxu0 0
      %832 = vmatprep.mubr.bf16.mxu0 0
      %833 = vmatmul.mubr.bf16.gmra.mrb[0].mxu0 %v678
      %v834 = vpop.f32.mrb[0].mxu0
      %v835 = vadd.f32 %v795, %v834
      %v836 = vpop.f32.mrb[0].mxu0
      %v837 = vpop.f32.mrb[0].mxu0
      %v838 = vpop.f32.mrb[0].mxu0
      %839 = vdwg.mxu0
      %v840 = vmax.f32 %v835, 0.0
      %v841 = vpack.c.bf16 %v840, %v840
      %v842 = vld [vmem:[%s2] sm:$0xf]
      %v843 = vld [vmem:[%s2 + $0x4] sm:$0xf]
      %v844 = vld [vmem:[%s2 + $0x8] sm:$0xf]
      %v845 = vld [vmem:[%s2 + $0xc] sm:$0xf]
      %v846 = vld [vmem:[%s2 + $0x10] sm:$0xf]
      %v847 = vld [vmem:[%s2 + $0x14] sm:$0xf]
      %v848 = vld [vmem:[%s2 + $0x18] sm:$0xf]
      %v849 = vld [vmem:[%s2 + $0x1c] sm:$0xf]
      %v850 = vld [vmem:[%s2 + $0x20] sm:$0xf]
      %v851 = vld [vmem:[%s2 + $0x24] sm:$0xf]
      %v852 = vld [vmem:[%s2 + $0x28] sm:$0xf]
      %v853 = vld [vmem:[%s2 + $0x2c] sm:$0xf]
      %v854 = vld [vmem:[%s2 + $0x30] sm:$0xf]
      %v855 = vld [vmem:[%s2 + $0x34] sm:$0xf]
      %v856 = vld [vmem:[%s2 + $0x38] sm:$0xf]
      %v857 = vld [vmem:[%s2 + $0x3c] sm:$0xf]
      %v858 = vlaneseq
      %v859 = vshrl.u32 %v858, 7
      %v860 = vsub.s32 1, %v859
      %v861 = vrot.slane %v251, %v860
      %v878 = vunpack.c.l.b16 %v842
      %v879 = vunpack.c.l.b16 %v843
      %v880 = vunpack.c.l.b16 %v844
      %v881 = vunpack.c.l.b16 %v845
      %v882 = vunpack.c.l.b16 %v846
      %v883 = vunpack.c.l.b16 %v847
      %v884 = vunpack.c.l.b16 %v848
      %v885 = vunpack.c.l.b16 %v849
      %v886 = vunpack.c.l.b16 %v850
      %v887 = vunpack.c.l.b16 %v851
      %v888 = vunpack.c.l.b16 %v852
      %v889 = vunpack.c.l.b16 %v853
      %v890 = vunpack.c.l.b16 %v854
      %v891 = vunpack.c.l.b16 %v855
      %v892 = vunpack.c.l.b16 %v856
      %v893 = vunpack.c.l.b16 %v857
      %v894 = vpack.c.b16 %v879, %v878
      %v895 = vpack.c.b16 %v881, %v880
      %v896 = vpack.c.b16 %v883, %v882
      %v897 = vpack.c.b16 %v885, %v884
      %v898 = vpack.c.b16 %v887, %v886
      %v899 = vpack.c.b16 %v889, %v888
      %v900 = vpack.c.b16 %v891, %v890
      %v901 = vpack.c.b16 %v893, %v892
      %910 = vmatprep.subr.bf16.mxu0 0
      %911 = vmatpush1.bf16.msra.mxu0 %v894
      %912 = vmatprep.subr.bf16.mxu0 0
      %913 = vmatpush1.bf16.msra.mxu0 %v895
      %914 = vmatprep.subr.bf16.mxu0 0
      %915 = vmatpush1.bf16.msra.mxu0 %v896
      %916 = vmatprep.subr.bf16.mxu0 0
      %917 = vmatpush1.bf16.msra.mxu0 %v897
      %918 = vmatprep.subr.bf16.mxu0 0
      %919 = vmatpush1.bf16.msra.mxu0 %v898
      %920 = vmatprep.subr.bf16.mxu0 0
      %921 = vmatpush1.bf16.msra.mxu0 %v899
      %922 = vmatprep.subr.bf16.mxu0 0
      %923 = vmatpush1.bf16.msra.mxu0 %v900
      %924 = vmatprep.subr.bf16.mxu0 0
      %925 = vmatpush1.bf16.msra.mxu0 %v901
      %926 = vmatprep.subr.bf16.mxu0 0
      %927 = vmatpush1.bf16.msra.mxu0 0
      %928 = vmatprep.subr.bf16.mxu0 0
      %929 = vmatpush1.bf16.msra.mxu0 0
      %930 = vmatprep.subr.bf16.mxu0 0
      %931 = vmatpush1.bf16.msra.mxu0 0
      %932 = vmatprep.subr.bf16.mxu0 0
      %933 = vmatpush1.bf16.msra.mxu0 0
      %934 = vmatprep.subr.bf16.mxu0 0
      %935 = vmatpush1.bf16.msra.mxu0 0
      %936 = vmatprep.subr.bf16.mxu0 0
      %937 = vmatpush1.bf16.msra.mxu0 0
      %938 = vmatprep.subr.bf16.mxu0 0
      %939 = vmatpush1.bf16.msra.mxu0 0
      %940 = vmatprep.subr.bf16.mxu0 0
      %941 = vmatpush1.bf16.msra.mxu0 0
      %942 = vmatprep.mubr.bf16.mxu0 0
      %943 = vmatmul.mubr.bf16.gmra.mrb[0].mxu0 %v841
      %v944 = vpop.f32.mrb[0].mxu0
      %v945 = vadd.f32 %v861, %v944
      %v946 = vpop.f32.mrb[0].mxu0
      %v947 = vpop.f32.mrb[0].mxu0
      %v948 = vpop.f32.mrb[0].mxu0
      %949 = vdwg.mxu0
      %v950 = vmax.f32 %v945, 0.0
      %v951 = vpack.c.bf16 %v950, %v950
      %v952 = vld [vmem:[%s3] sm:$0xf]
      %v953 = vld [vmem:[%s3 + $0x4] sm:$0xf]
      %v954 = vld [vmem:[%s3 + $0x8] sm:$0xf]
      %v955 = vld [vmem:[%s3 + $0xc] sm:$0xf]
      %v956 = vld [vmem:[%s3 + $0x10] sm:$0xf]
      %v957 = vld [vmem:[%s3 + $0x14] sm:$0xf]
      %v958 = vld [vmem:[%s3 + $0x18] sm:$0xf]
      %v959 = vld [vmem:[%s3 + $0x1c] sm:$0xf]
      %v960 = vld [vmem:[%s3 + $0x20] sm:$0xf]
      %v961 = vld [vmem:[%s3 + $0x24] sm:$0xf]
      %v962 = vld [vmem:[%s3 + $0x28] sm:$0xf]
      %v963 = vld [vmem:[%s3 + $0x2c] sm:$0xf]
      %v964 = vld [vmem:[%s3 + $0x30] sm:$0xf]
      %v965 = vld [vmem:[%s3 + $0x34] sm:$0xf]
      %v966 = vld [vmem:[%s3 + $0x38] sm:$0xf]
      %v967 = vld [vmem:[%s3 + $0x3c] sm:$0xf]
      %v968 = vlaneseq
      %v969 = vshrl.u32 %v968, 7
      %v970 = vsub.s32 2, %v969
      %v971 = vrot.slane %v251, %v970
      %v988 = vunpack.c.l.b16 %v952
      %v989 = vunpack.c.l.b16 %v953
      %v990 = vunpack.c.l.b16 %v954
      %v991 = vunpack.c.l.b16 %v955
      %v992 = vunpack.c.l.b16 %v956
      %v993 = vunpack.c.l.b16 %v957
      %v994 = vunpack.c.l.b16 %v958
      %v995 = vunpack.c.l.b16 %v959
      %v996 = vunpack.c.l.b16 %v960
      %v997 = vunpack.c.l.b16 %v961
      %v998 = vunpack.c.l.b16 %v962
      %v999 = vunpack.c.l.b16 %v963
      %v1000 = vunpack.c.l.b16 %v964
      %v1001 = vunpack.c.l.b16 %v965
      %v1002 = vunpack.c.l.b16 %v966
      %v1003 = vunpack.c.l.b16 %v967
      %v1004 = vpack.c.b16 %v989, %v988
      %v1005 = vpack.c.b16 %v991, %v990
      %v1006 = vpack.c.b16 %v993, %v992
      %v1007 = vpack.c.b16 %v995, %v994
      %v1008 = vpack.c.b16 %v997, %v996
      %v1009 = vpack.c.b16 %v999, %v998
      %v1010 = vpack.c.b16 %v1001, %v1000
      %v1011 = vpack.c.b16 %v1003, %v1002
      %1020 = vmatprep.subr.bf16.mxu0 0
      %1021 = vmatpush1.bf16.msra.mxu0 %v1004
      %1022 = vmatprep.subr.bf16.mxu0 0
      %1023 = vmatpush1.bf16.msra.mxu0 %v1005
      %1024 = vmatprep.subr.bf16.mxu0 0
      %1025 = vmatpush1.bf16.msra.mxu0 %v1006
      %1026 = vmatprep.subr.bf16.mxu0 0
      %1027 = vmatpush1.bf16.msra.mxu0 %v1007
      %1028 = vmatprep.subr.bf16.mxu0 0
      %1029 = vmatpush1.bf16.msra.mxu0 %v1008
      %1030 = vmatprep.subr.bf16.mxu0 0
      %1031 = vmatpush1.bf16.msra.mxu0 %v1009
      %1032 = vmatprep.subr.bf16.mxu0 0
      %1033 = vmatpush1.bf16.msra.mxu0 %v1010
      %1034 = vmatprep.subr.bf16.mxu0 0
      %1035 = vmatpush1.bf16.msra.mxu0 %v1011
      %1036 = vmatprep.subr.bf16.mxu0 0
      %1037 = vmatpush1.bf16.msra.mxu0 0
      %1038 = vmatprep.subr.bf16.mxu0 0
      %1039 = vmatpush1.bf16.msra.mxu0 0
      %1040 = vmatprep.subr.bf16.mxu0 0
      %1041 = vmatpush1.bf16.msra.mxu0 0
      %1042 = vmatprep.subr.bf16.mxu0 0
      %1043 = vmatpush1.bf16.msra.mxu0 0
      %1044 = vmatprep.subr.bf16.mxu0 0
      %1045 = vmatpush1.bf16.msra.mxu0 0
      %1046 = vmatprep.subr.bf16.mxu0 0
      %1047 = vmatpush1.bf16.msra.mxu0 0
      %1048 = vmatprep.subr.bf16.mxu0 0
      %1049 = vmatpush1.bf16.msra.mxu0 0
      %1050 = vmatprep.subr.bf16.mxu0 0
      %1051 = vmatpush1.bf16.msra.mxu0 0
      %1052 = vmatprep.mubr.bf16.mxu0 0
      %1053 = vmatmul.mubr.bf16.gmra.mrb[0].mxu0 %v951
      %v1054 = vpop.f32.mrb[0].mxu0
      %v1055 = vadd.f32 %v971, %v1054
      %v1056 = vpop.f32.mrb[0].mxu0
      %v1057 = vpop.f32.mrb[0].mxu0
      %v1058 = vpop.f32.mrb[0].mxu0
      %1059 = vdwg.mxu0
      %v1060 = vmax.f32 %v1055, 0.0
      %v1061 = vpack.c.bf16 %v1060, %v1060
      %v1062 = vld [vmem:[%s4] sm:$0xf]
      %v1063 = vld [vmem:[%s4 + $0x4] sm:$0xf]
      %v1064 = vld [vmem:[%s4 + $0x8] sm:$0xf]
      %v1065 = vld [vmem:[%s4 + $0xc] sm:$0xf]
      %v1066 = vld [vmem:[%s4 + $0x10] sm:$0xf]
      %v1067 = vld [vmem:[%s4 + $0x14] sm:$0xf]
      %v1068 = vld [vmem:[%s4 + $0x18] sm:$0xf]
      %v1069 = vld [vmem:[%s4 + $0x1c] sm:$0xf]
      %v1070 = vld [vmem:[%s4 + $0x20] sm:$0xf]
      %v1071 = vld [vmem:[%s4 + $0x24] sm:$0xf]
      %v1072 = vld [vmem:[%s4 + $0x28] sm:$0xf]
      %v1073 = vld [vmem:[%s4 + $0x2c] sm:$0xf]
      %v1074 = vld [vmem:[%s4 + $0x30] sm:$0xf]
      %v1075 = vld [vmem:[%s4 + $0x34] sm:$0xf]
      %v1076 = vld [vmem:[%s4 + $0x38] sm:$0xf]
      %v1077 = vld [vmem:[%s4 + $0x3c] sm:$0xf]
      %v1078 = vlaneseq
      %v1079 = vshrl.u32 %v1078, 7
      %v1080 = vsub.s32 3, %v1079
      %v1081 = vrot.slane %v251, %v1080
      %v1098 = vunpack.c.l.b16 %v1062
      %v1099 = vunpack.c.l.b16 %v1063
      %v1100 = vunpack.c.l.b16 %v1064
      %v1101 = vunpack.c.l.b16 %v1065
      %v1102 = vunpack.c.l.b16 %v1066
      %v1103 = vunpack.c.l.b16 %v1067
      %v1104 = vunpack.c.l.b16 %v1068
      %v1105 = vunpack.c.l.b16 %v1069
      %v1106 = vunpack.c.l.b16 %v1070
      %v1107 = vunpack.c.l.b16 %v1071
      %v1108 = vunpack.c.l.b16 %v1072
      %v1109 = vunpack.c.l.b16 %v1073
      %v1110 = vunpack.c.l.b16 %v1074
      %v1111 = vunpack.c.l.b16 %v1075
      %v1112 = vunpack.c.l.b16 %v1076
      %v1113 = vunpack.c.l.b16 %v1077
      %v1114 = vpack.c.b16 %v1099, %v1098
      %v1115 = vpack.c.b16 %v1101, %v1100
      %v1116 = vpack.c.b16 %v1103, %v1102
      %v1117 = vpack.c.b16 %v1105, %v1104
      %v1118 = vpack.c.b16 %v1107, %v1106
      %v1119 = vpack.c.b16 %v1109, %v1108
      %v1120 = vpack.c.b16 %v1111, %v1110
      %v1121 = vpack.c.b16 %v1113, %v1112
      %1130 = vmatprep.subr.bf16.mxu0 0
      %1131 = vmatpush1.bf16.msra.mxu0 %v1114
      %1132 = vmatprep.subr.bf16.mxu0 0
      %1133 = vmatpush1.bf16.msra.mxu0 %v1115
      %1134 = vmatprep.subr.bf16.mxu0 0
      %1135 = vmatpush1.bf16.msra.mxu0 %v1116
      %1136 = vmatprep.subr.bf16.mxu0 0
      %1137 = vmatpush1.bf16.msra.mxu0 %v1117
      %1138 = vmatprep.subr.bf16.mxu0 0
      %1139 = vmatpush1.bf16.msra.mxu0 %v1118
      %1140 = vmatprep.subr.bf16.mxu0 0
      %1141 = vmatpush1.bf16.msra.mxu0 %v1119
      %1142 = vmatprep.subr.bf16.mxu0 0
      %1143 = vmatpush1.bf16.msra.mxu0 %v1120
      %1144 = vmatprep.subr.bf16.mxu0 0
      %1145 = vmatpush1.bf16.msra.mxu0 %v1121
      %1146 = vmatprep.subr.bf16.mxu0 0
      %1147 = vmatpush1.bf16.msra.mxu0 0
      %1148 = vmatprep.subr.bf16.mxu0 0
      %1149 = vmatpush1.bf16.msra.mxu0 0
      %1150 = vmatprep.subr.bf16.mxu0 0
      %1151 = vmatpush1.bf16.msra.mxu0 0
      %1152 = vmatprep.subr.bf16.mxu0 0
      %1153 = vmatpush1.bf16.msra.mxu0 0
      %1154 = vmatprep.subr.bf16.mxu0 0
      %1155 = vmatpush1.bf16.msra.mxu0 0
      %1156 = vmatprep.subr.bf16.mxu0 0
      %1157 = vmatpush1.bf16.msra.mxu0 0
      %1158 = vmatprep.subr.bf16.mxu0 0
      %1159 = vmatpush1.bf16.msra.mxu0 0
      %1160 = vmatprep.subr.bf16.mxu0 0
      %1161 = vmatpush1.bf16.msra.mxu0 0
      %1162 = vmatprep.mubr.bf16.mxu0 0
      %1163 = vmatmul.mubr.bf16.gmra.mrb[0].mxu0 %v1061
      %v1164 = vpop.f32.mrb[0].mxu0
      %v1165 = vadd.f32 %v1081, %v1164
      %v1166 = vpop.f32.mrb[0].mxu0
      %v1167 = vpop.f32.mrb[0].mxu0
      %v1168 = vpop.f32.mrb[0].mxu0
      %1169 = vdwg.mxu0
      %1170 = vmax.xlane.f32.xlu0 %v1165
      %v1171 = vpop.xlane.xlu0 %1170
      %v1172 = vsub.f32 %v1165, %v1171
      %v1173 = vmul.f32 %v1172, 1.442695
      %v1174 = vpow.pop %v1173
      %1175 = vadd.xlane.f32.xlu0 %v1174
      %v1176 = vpop.xlane.xlu0 %1175
      %v1177 = vlog2.pop %v1176
      %v1178 = vmul.f32 %v1177, 0.6931472
      %v1179 = vsub.f32 %v1172, %v1178
      %1180 = vst [vmem:[%s249] sm:$0xff] %v1179
      %p1181 = scmp.lt.s32.totalorder %s17, 2
      %s1182 = scalar_select %p1181, %s17, 2
      %s1183 = smul.addr %s1182, 8
      %s1184 = scalar_lea.vmem %s6, %s1183
      // Predicated region
      $region45: #{mlp_forward.1} parent=43 // pred_check
        %p1185 = pneg %p166
      $region46: #{mlp_forward.1} parent=43 // pred_check_branch
        %1187 = sbr.rel (%p1185) target = $region48
      $region47: #{mlp_forward.1} parent=43 // pred_region
        _
      $region48: #{mlp_forward.1} parent=43 // pred_fallthru
        _
    $region44: #{mlp_forward.1} parent=5 // pred_fallthru
      _
    %p1188 = scmp.le.s32.totalorder 2, %s12
    // Predicated region
    $region49: #{mlp_forward.1} parent=5 // pred_check
      %p1189 = pneg %p1188
    $region50: #{mlp_forward.1} parent=5 // pred_check_branch
      %1191 = sbr.rel (%p1189) target = $region52
    $region51: #{mlp_forward.1} parent=5 // pred_region
      %s1192 = ssub.s32 %s12, 2
      // Predicated region
      $region53: #{mlp_forward.1} parent=51 // pred_check
        %p1193 = pneg %p172
      $region54: #{mlp_forward.1} parent=51 // pred_check_branch
        %1195 = sbr.rel (%p1193) target = $region56
      $region55: #{mlp_forward.1} parent=51 // pred_region
        %p1196 = scmp.lt.s32.totalorder %s18, 2
        %s1197 = scalar_select %p1196, %s18, 2
        %s1198 = smul.addr %s1197, 8
        %s1199 = scalar_lea.vmem %s6, %s1198
      $region56: #{mlp_forward.1} parent=51 // pred_fallthru
        _
    $region52: #{mlp_forward.1} parent=5 // pred_fallthru
      _
  $region6: #{mlp_forward.1} parent=0 // loop_footer
    %s16 = sadd.s32 1, %s12
  $region7: #{mlp_forward.1} parent=0 // loop_footer_branch
    %11 = sbr.rel target = $region3
  $region8: #{mlp_forward.1} parent=0 // loop_exit
    _

</llo_original>
